<compile_context>
chip_gen: v5e
topology: v5e:2x2
jax: 0.10.0
libtpu: 0.0.40
codegen_flags: <defaults>
</compile_context>

<pallas_src>
import jax
import jax.numpy as jnp
from jax.experimental import pallas as pl
from jax.experimental.pallas import tpu as pltpu


# ----------------------------------------------------------------------------- kernel

def _swish(h):
    # sigmoid(h) = 0.5 * (tanh(0.5*h) + 1): exact, numerically stable, and the
    # tanh goes to the EUP slot (no f32 divide on the VALU).
    return h * (0.5 * (jnp.tanh(0.5 * h) + 1.0))


def _mlp_q_kernel(obs_ref, act_ref, w1o_ref, w1a_ref, b1_ref,
                  w2_ref, b2_ref, w3_ref, b3_ref, q_ref):
    # obs_ref : [TB, obs_dim]   act_ref : [TB, act_dim]   (last timestep only)
    # w1o_ref : [obs_dim, H]    w1a_ref : [act_dim, H]    b1_ref : [1, H] (f32)
    # w2_ref  : [H, H]          b2_ref  : [1, H] (f32)
    # w3_ref  : [1, H] (f32, row form of the [H,1] weight)
    # b3_ref  : [1, 1] (SMEM scalar)
    # q_ref   : [TB, 1]
    mxu = w2_ref.dtype                        # f32 by default, bf16 when enabled
    o = obs_ref[...].astype(mxu)
    a = act_ref[...].astype(mxu)

    # Layer 1: concat(o, a) @ W1 == o @ W1_obs + a @ W1_act  (no in-kernel concat)
    h = (jnp.dot(o, w1o_ref[...], preferred_element_type=jnp.float32)
         + jnp.dot(a, w1a_ref[...], preferred_element_type=jnp.float32)
         + b1_ref[...])
    h = _swish(h)

    # Layer 2 (f32 accumulation regardless of MXU operand dtype)
    h = jnp.dot(h.astype(mxu), w2_ref[...],
                preferred_element_type=jnp.float32) + b2_ref[...]
    h = _swish(h)

    # Layer 3 (H -> 1): VPU multiply + XLU lane reduction instead of an N=1 MXU matmul.
    q = jnp.sum(h * w3_ref[...], axis=-1, keepdims=True) + b3_ref[0, 0]
    q_ref[...] = q.astype(q_ref.dtype)


# ----------------------------------------------------------------------------- tiling

def _pick_tile_b(batch, max_tile=4096):
    """Largest multiple-of-8 batch tile that divides B; grid >= 2 once B > 256."""
    if batch <= 256:
        # Per-core work too small to amortize the ~0.35us/step grid overhead by
        # splitting; take the whole batch as one block.
        return batch
    hi = min(max_tile, batch // 2)        # quotient >= 2 -> both v7x TCs get work
    hi -= hi % 8
    for t in range(hi, 7, -8):
        if batch % t == 0:
            return t
    return batch                          # no aligned divisor: single block (see TODO)


def _vmem_limit_bytes(tile_b, obs_dim, act_dim, hidden, mxu_bytes):
    """Explicit VMEM budget (v7x has 64 MiB physical / 32 MiB default scoped)."""
    lanes = lambda d: -(-d // 128) * 128
    subs = lambda d: -(-d // 8) * 8
    f32 = 4
    act_in = 2 * subs(tile_b) * (lanes(obs_dim) + lanes(act_dim)) * f32  # double-buffered
    out = 2 * subs(tile_b) * lanes(1) * f32
    weights = ((subs(obs_dim) + subs(act_dim) + subs(hidden)) * lanes(hidden) * mxu_bytes
               + 3 * 8 * lanes(hidden) * f32)                            # single-buffered
    live = 2 * subs(tile_b) * lanes(hidden) * f32                        # h intermediates
    budget = act_in + out + weights + live + (4 << 20)                   # compiler slack
    return int(min(max(budget, 8 << 20), 64 << 20))


# ----------------------------------------------------------------------------- wrapper

def mlp_q_pallas(obs, action, kparams, *, tile_b=None):
    """obs: [B, T, obs_dim], action: [B, T, act_dim] -> q: [B, 1] float32."""
    w1o, w1a, b1, w2, b2, w3_row, b3 = kparams
    B, _, obs_dim = obs.shape
    act_dim = action.shape[-1]
    assert action.shape[0] == B, "obs/action must share the batch dimension"
    H = w2.shape[0]

    # Last-timestep selection outside the kernel: the kernel then streams only
    # B*(obs_dim+act_dim) activation bytes instead of T x that (and avoids an
    # in-kernel sublane gather).  Matches torch's obs[:, -1] / action[:, -1].
    obs_last = obs[:, -1]            # [B, obs_dim]
    act_last = action[:, -1]         # [B, act_dim]

    if tile_b is None:
        tile_b = _pick_tile_b(B)
    assert B % tile_b == 0, (B, tile_b)
    grid = (B // tile_b,)

    mxu_bytes = jnp.dtype(w2.dtype).itemsize
    vmem_limit = _vmem_limit_bytes(tile_b, obs_dim, act_dim, H, mxu_bytes)

    # Weights/biases never change across the grid: keep a single VMEM copy.
    resident = dict(pipeline_mode=pl.Buffered(1))

    return pl.pallas_call(
        _mlp_q_kernel,
        out_shape=jax.ShapeDtypeStruct((B, 1), jnp.float32),
        grid_spec=pltpu.PrefetchScalarGridSpec(
            num_scalar_prefetch=0,
            grid=grid,
            in_specs=[
                # Activations: blocked over batch; minor dims are full array dims
                # (or multiple-of-8 tiles), so no (8,128) alignment issues.
                pl.BlockSpec((tile_b, obs_dim), lambda i: (i, 0)),
                pl.BlockSpec((tile_b, act_dim), lambda i: (i, 0)),
                # Weights/biases: constant index_map + single-buffered -> VMEM-resident.
                pl.BlockSpec((obs_dim, H), lambda i: (0, 0), **resident),
                pl.BlockSpec((act_dim, H), lambda i: (0, 0), **resident),
                pl.BlockSpec((1, H), lambda i: (0, 0), **resident),
                pl.BlockSpec((H, H), lambda i: (0, 0), **resident),
                pl.BlockSpec((1, H), lambda i: (0, 0), **resident),
                pl.BlockSpec((1, H), lambda i: (0, 0), **resident),
                # b3 scalar in SMEM (avoids a padded VMEM tile + vector load).
                pl.BlockSpec((1, 1), lambda i: (0, 0),
                             memory_space=pltpu.MemorySpace.SMEM),
            ],
            out_specs=pl.BlockSpec((tile_b, 1), lambda i: (i, 0)),
        ),
        compiler_params=pltpu.CompilerParams(
            # Batch axis is independent -> shard over v7x's 2 TensorCores at scale.
            dimension_semantics=("parallel",),
            vmem_limit_bytes=vmem_limit,
        ),
    )(obs_last, act_last, w1o, w1a, b1, w2, b2, w3_row, b3)


def mlp_q_agent_forward(obs, action, kparams):
    """Forward: last-step slice (wrapper) + split-W1 3-layer MLP in one pallas_call."""
    return mlp_q_pallas(obs, action, kparams)


# ----------------------------------------------------------------------------- params

def init_params(key, obs_dim, action_dim, embed_dim):
    """PyTorch-style nn.Linear init (uniform +-1/sqrt(fan_in)); PyTorch layout."""
    f_in = obs_dim + action_dim
    ks = jax.random.split(key, 6)

    def lin(kw, kb, fan_in, fan_out):
        bound = 1.0 / jnp.sqrt(fan_in)
        w = jax.random.uniform(kw, (fan_in, fan_out), jnp.float32, -bound, bound)
        b = jax.random.uniform(kb, (fan_out,), jnp.float32, -bound, bound)
        return w, b

    w1, b1 = lin(ks[0], ks[1], f_in, embed_dim)
    w2, b2 = lin(ks[2], ks[3], embed_dim, embed_dim)
    w3, b3 = lin(ks[4], ks[5], embed_dim, 1)
    # NOTE: cls_token and sigma_param exist in __init__ but are unused in forward.
    return (w1, b1, w2, b2, w3, b3)


def pack_params_for_kernel(params, obs_dim, *, mxu_dtype=jnp.float32):
    """One-time prep: split w1 by input block, 2-D biases/w3, optional bf16 MXU weights.

    Set mxu_dtype=jnp.bfloat16 at large batch on v6e/v7x (MXU-push bound regime);
    keep the default f32 for small batches / exact numerics.  Bias and w3 stay f32
    (VPU/EUP math is kept in f32 everywhere, incl. on v5e which has no bf16 VALU).
    """
    w1, b1, w2, b2, w3, b3 = params
    H = w2.shape[0]
    w1o = w1[:obs_dim, :].astype(mxu_dtype)        # [obs_dim, H]
    w1a = w1[obs_dim:, :].astype(mxu_dtype)        # [act_dim, H]
    return (w1o, w1a,
            b1.reshape(1, H).astype(jnp.float32),
            w2.astype(mxu_dtype),
            b2.reshape(1, H).astype(jnp.float32),
            w3.reshape(1, H).astype(jnp.float32),
            b3.reshape(1, 1).astype(jnp.float32))


# ----------------------------------------------------------------------------- reference

def _reference(obs, action, params):
    w1, b1, w2, b2, w3, b3 = params
    x = jnp.concatenate((obs[:, -1], action[:, -1]), axis=-1)
    h = x @ w1 + b1
    h = h * jax.nn.sigmoid(h)
    h = h @ w2 + b2
    h = h * jax.nn.sigmoid(h)
    return h @ w3 + b3


# ----------------------------------------------------------------------------- main

if __name__ == "__main__":
    # Small config consistent with the module:
    #   context_len (T) = 8, obs_space = 16, action_space = 8, n_embed = 32
    B, T, OBS_DIM, ACT_DIM, EMBED = 2, 8, 16, 8, 32

    key = jax.random.PRNGKey(0)
    k_obs, k_act, k_par = jax.random.split(key, 3)

    obs = jax.random.normal(k_obs, (B, T, OBS_DIM), jnp.float32)
    action = jax.random.normal(k_act, (B, T, ACT_DIM), jnp.float32)
    params = init_params(k_par, OBS_DIM, ACT_DIM, EMBED)
    kparams = pack_params_for_kernel(params, OBS_DIM)   # f32 MXU path at toy size

    fwd = jax.jit(mlp_q_agent_forward)
    q = jax.block_until_ready(fwd(obs, action, kparams))

    q_ref = _reference(obs, action, params)
    assert q.shape == (B, 1), q.shape
    assert jnp.allclose(q, q_ref, atol=1e-4, rtol=1e-4), (q, q_ref)

    print("KERNEL_OK")
</pallas_src>

<mosaic_0001>
module attributes {stable_mosaic.version = 11 : i64} {
  func.func @_mlp_q_kernel(%arg0: i32, %arg1: memref<2x16xf32, #tpu.memory_space<vmem>>, %arg2: memref<2x8xf32, #tpu.memory_space<vmem>>, %arg3: memref<16x32xf32, #tpu.memory_space<vmem>>, %arg4: memref<8x32xf32, #tpu.memory_space<vmem>>, %arg5: memref<1x32xf32, #tpu.memory_space<vmem>>, %arg6: memref<32x32xf32, #tpu.memory_space<vmem>>, %arg7: memref<1x32xf32, #tpu.memory_space<vmem>>, %arg8: memref<1x32xf32, #tpu.memory_space<vmem>>, %arg9: memref<1x1xf32, #tpu.memory_space<smem>>, %arg10: memref<2x1xf32, #tpu.memory_space<vmem>>) attributes {dimension_semantics = [#tpu.dimension_semantics<parallel>], iteration_bounds = array<i64: 1>, scalar_prefetch = 0 : i64, scratch_operands = 0 : i64, tpu.core_type = #tpu.core_type<tc>, window_params = [{transform_indices = @transform_0, window_bounds = array<i64: 2, 16>}, {transform_indices = @transform_1, window_bounds = array<i64: 2, 8>}, {pipeline_mode = #tpu.pipeline_mode<synchronous>, transform_indices = @transform_2, window_bounds = array<i64: 16, 32>}, {pipeline_mode = #tpu.pipeline_mode<synchronous>, transform_indices = @transform_3, window_bounds = array<i64: 8, 32>}, {pipeline_mode = #tpu.pipeline_mode<synchronous>, transform_indices = @transform_4, window_bounds = array<i64: 1, 32>}, {pipeline_mode = #tpu.pipeline_mode<synchronous>, transform_indices = @transform_5, window_bounds = array<i64: 32, 32>}, {pipeline_mode = #tpu.pipeline_mode<synchronous>, transform_indices = @transform_6, window_bounds = array<i64: 1, 32>}, {pipeline_mode = #tpu.pipeline_mode<synchronous>, transform_indices = @transform_7, window_bounds = array<i64: 1, 32>}, {transform_indices = @transform_8, window_bounds = array<i64: 1, 1>}, {transform_indices = @transform_9, window_bounds = array<i64: 2, 1>}]} {
    %c0 = arith.constant 0 : index
    %c0_0 = arith.constant 0 : index
    %0 = vector.load %arg1[%c0, %c0_0] : memref<2x16xf32, #tpu.memory_space<vmem>>, vector<2x16xf32>
    %c0_1 = arith.constant 0 : index
    %c0_2 = arith.constant 0 : index
    %1 = vector.load %arg2[%c0_1, %c0_2] : memref<2x8xf32, #tpu.memory_space<vmem>>, vector<2x8xf32>
    %c0_3 = arith.constant 0 : index
    %c0_4 = arith.constant 0 : index
    %2 = vector.load %arg3[%c0_3, %c0_4] : memref<16x32xf32, #tpu.memory_space<vmem>>, vector<16x32xf32>
    %cst = arith.constant dense<0.000000e+00> : vector<2x32xf32>
    %3 = tpu.matmul %0, %2, %cst {dimension_numbers = #tpu.dot_dimension_numbers<[1], [0], [0], [1], [0, 0, 1, 1], [], []>} : vector<2x16xf32>, vector<16x32xf32>, vector<2x32xf32> -> vector<2x32xf32>
    %c0_5 = arith.constant 0 : index
    %c0_6 = arith.constant 0 : index
    %4 = vector.load %arg4[%c0_5, %c0_6] : memref<8x32xf32, #tpu.memory_space<vmem>>, vector<8x32xf32>
    %cst_7 = arith.constant dense<0.000000e+00> : vector<2x32xf32>
    %5 = tpu.matmul %1, %4, %cst_7 {dimension_numbers = #tpu.dot_dimension_numbers<[1], [0], [0], [1], [0, 0, 1, 1], [], []>} : vector<2x8xf32>, vector<8x32xf32>, vector<2x32xf32> -> vector<2x32xf32>
    %6 = arith.addf %3, %5 : vector<2x32xf32>
    %c0_8 = arith.constant 0 : index
    %c0_9 = arith.constant 0 : index
    %7 = vector.load %arg5[%c0_8, %c0_9] : memref<1x32xf32, #tpu.memory_space<vmem>>, vector<1x32xf32>
    %8 = vector.broadcast %7 : vector<1x32xf32> to vector<2x32xf32>
    %9 = arith.addf %6, %8 : vector<2x32xf32>
    %cst_10 = arith.constant 5.000000e-01 : f32
    %10 = vector.broadcast %cst_10 : f32 to vector<2x32xf32>
    %11 = arith.mulf %10, %9 : vector<2x32xf32>
    %12 = math.tanh %11 : vector<2x32xf32>
    %cst_11 = arith.constant 1.000000e+00 : f32
    %13 = vector.broadcast %cst_11 : f32 to vector<2x32xf32>
    %14 = arith.addf %12, %13 : vector<2x32xf32>
    %cst_12 = arith.constant 5.000000e-01 : f32
    %15 = vector.broadcast %cst_12 : f32 to vector<2x32xf32>
    %16 = arith.mulf %15, %14 : vector<2x32xf32>
    %17 = arith.mulf %9, %16 : vector<2x32xf32>
    %c0_13 = arith.constant 0 : index
    %c0_14 = arith.constant 0 : index
    %18 = vector.load %arg6[%c0_13, %c0_14] : memref<32x32xf32, #tpu.memory_space<vmem>>, vector<32x32xf32>
    %cst_15 = arith.constant dense<0.000000e+00> : vector<2x32xf32>
    %19 = tpu.matmul %17, %18, %cst_15 {dimension_numbers = #tpu.dot_dimension_numbers<[1], [0], [0], [1], [0, 0, 1, 1], [], []>} : vector<2x32xf32>, vector<32x32xf32>, vector<2x32xf32> -> vector<2x32xf32>
    %c0_16 = arith.constant 0 : index
    %c0_17 = arith.constant 0 : index
    %20 = vector.load %arg7[%c0_16, %c0_17] : memref<1x32xf32, #tpu.memory_space<vmem>>, vector<1x32xf32>
    %21 = vector.broadcast %20 : vector<1x32xf32> to vector<2x32xf32>
    %22 = arith.addf %19, %21 : vector<2x32xf32>
    %cst_18 = arith.constant 5.000000e-01 : f32
    %23 = vector.broadcast %cst_18 : f32 to vector<2x32xf32>
    %24 = arith.mulf %23, %22 : vector<2x32xf32>
    %25 = math.tanh %24 : vector<2x32xf32>
    %cst_19 = arith.constant 1.000000e+00 : f32
    %26 = vector.broadcast %cst_19 : f32 to vector<2x32xf32>
    %27 = arith.addf %25, %26 : vector<2x32xf32>
    %cst_20 = arith.constant 5.000000e-01 : f32
    %28 = vector.broadcast %cst_20 : f32 to vector<2x32xf32>
    %29 = arith.mulf %28, %27 : vector<2x32xf32>
    %30 = arith.mulf %22, %29 : vector<2x32xf32>
    %c0_21 = arith.constant 0 : index
    %c0_22 = arith.constant 0 : index
    %31 = vector.load %arg8[%c0_21, %c0_22] : memref<1x32xf32, #tpu.memory_space<vmem>>, vector<1x32xf32>
    %32 = vector.broadcast %31 : vector<1x32xf32> to vector<2x32xf32>
    %33 = arith.mulf %30, %32 : vector<2x32xf32>
    %cst_23 = arith.constant dense<0.000000e+00> : vector<2xf32>
    %34 = vector.multi_reduction <add>, %33, %cst_23 [1] : vector<2x32xf32> to vector<2xf32>
    %35 = vector.shape_cast %34 : vector<2xf32> to vector<2x1xf32>
    %c0_24 = arith.constant 0 : index
    %c0_25 = arith.constant 0 : index
    %36 = memref.load %arg9[%c0_24, %c0_25] : memref<1x1xf32, #tpu.memory_space<smem>>
    %37 = vector.broadcast %36 : f32 to vector<2x1xf32>
    %38 = arith.addf %35, %37 : vector<2x1xf32>
    %c0_26 = arith.constant 0 : index
    %c0_27 = arith.constant 0 : index
    %39 = vector.load %arg10[%c0_26, %c0_27] : memref<2x1xf32, #tpu.memory_space<vmem>>, vector<2x1xf32>
    tpu.vector_store %arg10[%c0_26, %c0_27], %38 {strides = array<i32>} : memref<2x1xf32, #tpu.memory_space<vmem>>, vector<2x1xf32>,
    return
  }
  func.func @transform_0(%arg0: i32) -> (i32, i32) {
    %c0_i32 = arith.constant 0 : i32
    %c0_i32_0 = arith.constant 0 : i32
    return %arg0, %c0_i32 : i32, i32
  }
  func.func @transform_1(%arg0: i32) -> (i32, i32) {
    %c0_i32 = arith.constant 0 : i32
    %c0_i32_0 = arith.constant 0 : i32
    return %arg0, %c0_i32 : i32, i32
  }
  func.func @transform_2(%arg0: i32) -> (i32, i32) {
    %c0_i32 = arith.constant 0 : i32
    %c0_i32_0 = arith.constant 0 : i32
    %c0_i32_1 = arith.constant 0 : i32
    return %c0_i32, %c0_i32_0 : i32, i32
  }
  func.func @transform_3(%arg0: i32) -> (i32, i32) {
    %c0_i32 = arith.constant 0 : i32
    %c0_i32_0 = arith.constant 0 : i32
    %c0_i32_1 = arith.constant 0 : i32
    return %c0_i32, %c0_i32_0 : i32, i32
  }
  func.func @transform_4(%arg0: i32) -> (i32, i32) {
    %c0_i32 = arith.constant 0 : i32
    %c0_i32_0 = arith.constant 0 : i32
    %c0_i32_1 = arith.constant 0 : i32
    return %c0_i32, %c0_i32_0 : i32, i32
  }
  func.func @transform_5(%arg0: i32) -> (i32, i32) {
    %c0_i32 = arith.constant 0 : i32
    %c0_i32_0 = arith.constant 0 : i32
    %c0_i32_1 = arith.constant 0 : i32
    return %c0_i32, %c0_i32_0 : i32, i32
  }
  func.func @transform_6(%arg0: i32) -> (i32, i32) {
    %c0_i32 = arith.constant 0 : i32
    %c0_i32_0 = arith.constant 0 : i32
    %c0_i32_1 = arith.constant 0 : i32
    return %c0_i32, %c0_i32_0 : i32, i32
  }
  func.func @transform_7(%arg0: i32) -> (i32, i32) {
    %c0_i32 = arith.constant 0 : i32
    %c0_i32_0 = arith.constant 0 : i32
    %c0_i32_1 = arith.constant 0 : i32
    return %c0_i32, %c0_i32_0 : i32, i32
  }
  func.func @transform_8(%arg0: i32) -> (i32, i32) {
    %c0_i32 = arith.constant 0 : i32
    %c0_i32_0 = arith.constant 0 : i32
    %c0_i32_1 = arith.constant 0 : i32
    return %c0_i32, %c0_i32_0 : i32, i32
  }
  func.func @transform_9(%arg0: i32) -> (i32, i32) {
    %c0_i32 = arith.constant 0 : i32
    %c0_i32_0 = arith.constant 0 : i32
    return %arg0, %c0_i32 : i32, i32
  }
}

</mosaic_0001>

<llo_original>
// kernel: mlp_q_agent_forward.1
$region0: #{mlp_q_agent_forward.1}
  #allocation0 [shape = 'u32[]', space=smem, size = 0x4, offset = 0x4, fixed_abs, tag = 'smem constant byte address 0x4 - core index']
  #allocation1 [shape = 'u32[72,128]{1,0:T(1,128)}', space=vmem, size = 0x9000, scoped, tag = 'internal scratch']
  #allocation2 [shape = 'f32[1,1]{1,0:T(1,128)S(6)}', space=smem, size = 0x200, scoped, tag = 'scoped memory for mlp_q_agent_forward.1']
  %s0 = inlined_call_operand.vmem [shape: f32[2,16], index: 0, kind: input, shape index: {}]
  %s1 = inlined_call_operand.vmem [shape: f32[2,8], index: 1, kind: input, shape index: {}]
  %s2 = inlined_call_operand.hbm [shape: f32[16,32], index: 2, kind: input, shape index: {}]
  %s3 = inlined_call_operand.vmem [shape: f32[8,32], index: 3, kind: input, shape index: {}]
  %s4 = inlined_call_operand.vmem [shape: f32[1,32], index: 4, kind: input, shape index: {}]
  %s5 = inlined_call_operand.hbm [shape: f32[32,32], index: 5, kind: input, shape index: {}]
  %s6 = inlined_call_operand.vmem [shape: f32[1,32], index: 6, kind: input, shape index: {}]
  %s7 = inlined_call_operand.vmem [shape: f32[1,32], index: 7, kind: input, shape index: {}]
  %s8 = inlined_call_operand.<no memory space> [shape: f32[1,1], index: 8, kind: input, shape index: {}]
  %s9 = inlined_call_operand.vmem [shape: f32[2,1], index: 9, kind: output, shape index: {}]
  %s10 = sld [smem:[#allocation0]]
  $region54: #{mlp_q_agent_forward.1} parent=0
    _
  %s12 = ssub.s32 1, %s10
  %s13 = scalar_select 0, %s12, %s10
  %14 = sst [smem:[#allocation2]] %s8
  $region1: #{mlp_q_agent_forward.1} parent=0
    #allocation3 [shape = 'u8[8192]{0}', space=vmem, size = 0x2000, scoped, tag = 'input window, operand 2, single buffered']
    #allocation4 [shape = 's32[1]{0}', space=sflag, size = 0x4, scoped, tag = 'scoped memory for mlp_q_agent_forward.1']
    #allocation5 [shape = 'u8[16384]{0}', space=vmem, size = 0x4000, scoped, tag = 'input window, operand 5, single buffered']
    #allocation6 [shape = 's32[1]{0}', space=sflag, size = 0x4, scoped, tag = 'scoped memory for mlp_q_agent_forward.1']
    %15 = vsyncpa [#allocation4], 0
    %16 = vsyncpa [#allocation6], 0
    // Predicated region
    $region2: #{mlp_q_agent_forward.1} parent=1 // pred_check
      _
    $region3: #{mlp_q_agent_forward.1} parent=1 // pred_check_branch
      %18 = sbr.rel (0) target = $region5
    $region4: #{mlp_q_agent_forward.1} parent=1 // pred_region
      _
    $region5: #{mlp_q_agent_forward.1} parent=1 // pred_fallthru
      _
    // Predicated region
    $region6: #{mlp_q_agent_forward.1} parent=1 // pred_check
      _
    $region7: #{mlp_q_agent_forward.1} parent=1 // pred_check_branch
      %20 = sbr.rel (0) target = $region9
    $region8: #{mlp_q_agent_forward.1} parent=1 // pred_region
      _
    $region9: #{mlp_q_agent_forward.1} parent=1 // pred_fallthru
      _
    // Predicated region
    $region10: #{mlp_q_agent_forward.1} parent=1 // pred_check
      _
    $region11: #{mlp_q_agent_forward.1} parent=1 // pred_check_branch
      %22 = sbr.rel (0) target = $region13
    $region12: #{mlp_q_agent_forward.1} parent=1 // pred_region
      %24 = vsyncadd [#allocation4], 0
      %s25 = sshll.u32 %s2, 4
      %s26 = int_to_ptr.hbm [resolvable:$true] %s25
      %s27 = sshll.u32 [#allocation3], 4
      %s28 = int_to_ptr.vmem [resolvable:$true] %s27
      %33 = dma.hbm_to_vmem [thread:$0]  %s26, 256, %s28, [#allocation4], 128, 128, 8
    $region13: #{mlp_q_agent_forward.1} parent=1 // pred_fallthru
      _
    // Predicated region
    $region14: #{mlp_q_agent_forward.1} parent=1 // pred_check
      _
    $region15: #{mlp_q_agent_forward.1} parent=1 // pred_check_branch
      %35 = sbr.rel (0) target = $region17
    $region16: #{mlp_q_agent_forward.1} parent=1 // pred_region
      _
    $region17: #{mlp_q_agent_forward.1} parent=1 // pred_fallthru
      _
    // Predicated region
    $region18: #{mlp_q_agent_forward.1} parent=1 // pred_check
      _
    $region19: #{mlp_q_agent_forward.1} parent=1 // pred_check_branch
      %37 = sbr.rel (0) target = $region21
    $region20: #{mlp_q_agent_forward.1} parent=1 // pred_region
      _
    $region21: #{mlp_q_agent_forward.1} parent=1 // pred_fallthru
      _
    // Predicated region
    $region22: #{mlp_q_agent_forward.1} parent=1 // pred_check
      _
    $region23: #{mlp_q_agent_forward.1} parent=1 // pred_check_branch
      %39 = sbr.rel (0) target = $region25
    $region24: #{mlp_q_agent_forward.1} parent=1 // pred_region
      %41 = vsyncadd [#allocation6], 0
      %s42 = sshll.u32 %s5, 4
      %s43 = int_to_ptr.hbm [resolvable:$true] %s42
      %s44 = sshll.u32 [#allocation5], 4
      %s45 = int_to_ptr.vmem [resolvable:$true] %s44
      %50 = dma.hbm_to_vmem [thread:$0]  %s43, 512, %s45, [#allocation6], 128, 128, 8
    $region25: #{mlp_q_agent_forward.1} parent=1 // pred_fallthru
      _
    // Predicated region
    $region26: #{mlp_q_agent_forward.1} parent=1 // pred_check
      _
    $region27: #{mlp_q_agent_forward.1} parent=1 // pred_check_branch
      %52 = sbr.rel (0) target = $region29
    $region28: #{mlp_q_agent_forward.1} parent=1 // pred_region
      _
    $region29: #{mlp_q_agent_forward.1} parent=1 // pred_fallthru
      _
    // Predicated region
    $region30: #{mlp_q_agent_forward.1} parent=1 // pred_check
      _
    $region31: #{mlp_q_agent_forward.1} parent=1 // pred_check_branch
      %54 = sbr.rel (0) target = $region33
    $region32: #{mlp_q_agent_forward.1} parent=1 // pred_region
      _
    $region33: #{mlp_q_agent_forward.1} parent=1 // pred_fallthru
      _
    // Predicated region
    $region34: #{mlp_q_agent_forward.1} parent=1 // pred_check
      _
    $region35: #{mlp_q_agent_forward.1} parent=1 // pred_check_branch
      %56 = sbr.rel (0) target = $region37
    $region36: #{mlp_q_agent_forward.1} parent=1 // pred_region
      _
    $region37: #{mlp_q_agent_forward.1} parent=1 // pred_fallthru
      _
    // Predicated region
    $region38: #{mlp_q_agent_forward.1} parent=1 // pred_check
      _
    $region39: #{mlp_q_agent_forward.1} parent=1 // pred_check_branch
      %58 = sbr.rel (0) target = $region41
    $region40: #{mlp_q_agent_forward.1} parent=1 // pred_region
      %60 = dma.done [#allocation4], 256
    $region41: #{mlp_q_agent_forward.1} parent=1 // pred_fallthru
      _
    // Predicated region
    $region42: #{mlp_q_agent_forward.1} parent=1 // pred_check
      _
    $region43: #{mlp_q_agent_forward.1} parent=1 // pred_check_branch
      %62 = sbr.rel (0) target = $region45
    $region44: #{mlp_q_agent_forward.1} parent=1 // pred_region
      %64 = dma.done [#allocation6], 512
    $region45: #{mlp_q_agent_forward.1} parent=1 // pred_fallthru
      _
    %v65 = vld [vmem:[%s0] sm:$0x3]
    %v66 = vld [vmem:[%s1] sm:$0x3]
    %v67 = vld [vmem:[#allocation3] sm:$0xff]
    %v68 = vld [vmem:[#allocation3 + $0x8] sm:$0xff]
    %v69 = vld [vmem:[%s3] sm:$0xff]
    %vm70 = vcmask 64512
    %v72 = vsel %vm70, %v66, 0
    %74 = vmatpush.msra.mxu0 0.0
    %75 = vmatpush.msra.mxu0 0.0
    %76 = vmatpush.msra.mxu0 0.0
    %77 = vmatpush.msra.mxu0 0.0
    %78 = vmatpush.msra.mxu0 0.0
    %79 = vmatpush.msra.mxu0 0.0
    %80 = vmatpush.msra.mxu0 0.0
    %81 = vmatpush.msra.mxu0 0.0
    %82 = vmatpush.msra.mxu0 0.0
    %83 = vmatpush.msra.mxu0 0.0
    %84 = vmatpush.msra.mxu0 0.0
    %85 = vmatpush.msra.mxu0 0.0
    %86 = vmatpush.msra.mxu0 0.0
    %87 = vmatpush.msra.mxu0 0.0
    %88 = vmatpush.msra.mxu0 0.0
    %89 = vmatpush.msra.mxu0 %v69
    %90 = vmatmul.f32.gmra.mxu0 %v72
    %v91 = vpop.f32.mrf.mxu0
    %v92 = vadd.f32 0.0, %v91
    %93 = vdwg.mxu0
    %vm94 = vcmask 130048
    %v96 = vsel %vm94, %v65, 0
    %98 = vmatpush.msra.mxu0 0.0
    %99 = vmatpush.msra.mxu0 0.0
    %100 = vmatpush.msra.mxu0 0.0
    %101 = vmatpush.msra.mxu0 0.0
    %102 = vmatpush.msra.mxu0 0.0
    %103 = vmatpush.msra.mxu0 0.0
    %104 = vmatpush.msra.mxu0 0.0
    %105 = vmatpush.msra.mxu0 0.0
    %106 = vmatpush.msra.mxu0 0.0
    %107 = vmatpush.msra.mxu0 0.0
    %108 = vmatpush.msra.mxu0 0.0
    %109 = vmatpush.msra.mxu0 0.0
    %110 = vmatpush.msra.mxu0 0.0
    %111 = vmatpush.msra.mxu0 0.0
    %112 = vmatpush.msra.mxu0 %v68
    %113 = vmatpush.msra.mxu0 %v67
    %114 = vmatmul.f32.gmra.mxu0 %v96
    %v115 = vpop.f32.mrf.mxu0
    %v116 = vadd.f32 %v92, %v115
    %117 = vdwg.mxu0
    %v118 = vld [vmem:[%s4] sm:$0x1]
    %v120 = vperm.slane %v118, 0
    %v122 = vadd.f32 %v116, %v120
    %v123 = vmul.f32 %v122, 0.5
    %v124 = vtanh.pop %v123
    %v125 = vadd.f32 %v124, 1.0
    %v126 = vmul.f32 %v125, 0.5
    %v127 = vmul.f32 %v122, %v126
    %v128 = vld [vmem:[#allocation5] sm:$0xff]
    %v129 = vld [vmem:[#allocation5 + $0x8] sm:$0xff]
    %v130 = vld [vmem:[#allocation5 + $0x10] sm:$0xff]
    %v131 = vld [vmem:[#allocation5 + $0x18] sm:$0xff]
    %v132 = vld [vmem:[%s6] sm:$0x1]
    %v134 = vperm.slane %v132, 0
    %vm136 = vcmask 261120
    %v138 = vsel %vm136, %v127, 0
    %140 = vmatpush.msra.mxu0 0.0
    %141 = vmatpush.msra.mxu0 0.0
    %142 = vmatpush.msra.mxu0 0.0
    %143 = vmatpush.msra.mxu0 0.0
    %144 = vmatpush.msra.mxu0 0.0
    %145 = vmatpush.msra.mxu0 0.0
    %146 = vmatpush.msra.mxu0 0.0
    %147 = vmatpush.msra.mxu0 0.0
    %148 = vmatpush.msra.mxu0 0.0
    %149 = vmatpush.msra.mxu0 0.0
    %150 = vmatpush.msra.mxu0 0.0
    %151 = vmatpush.msra.mxu0 0.0
    %152 = vmatpush.msra.mxu0 %v131
    %153 = vmatpush.msra.mxu0 %v130
    %154 = vmatpush.msra.mxu0 %v129
    %155 = vmatpush.msra.mxu0 %v128
    %156 = vmatmul.f32.gmra.mxu0 %v138
    %v157 = vpop.f32.mrf.mxu0
    %v158 = vadd.f32 %v134, %v157
    %159 = vdwg.mxu0
    %v160 = vmul.f32 %v158, 0.5
    %v161 = vtanh.pop %v160
    %v162 = vadd.f32 %v161, 1.0
    %v163 = vmul.f32 %v162, 0.5
    %v164 = vmul.f32 %v158, %v163
    %v165 = vld [vmem:[%s7] sm:$0x1]
    %v167 = vperm.slane %v165, 0
    %v169 = vmul.f32 %v164, %v167
    %vm170 = vcmask 254976
    %v171 = vsel %vm170, %v169, 0.0
    %172 = vadd.xlane.f32.xlu0 %v171
    %v173 = vpop.xlane.xlu0 %172
    %s174 = sld [smem:[#allocation2]]
    %v175 = vstv %s174
    %v176 = vadd.f32 %v173, %v175
    %vm177 = vcmask 1024
    %178 = vst.msk [vmem:[%s9] sm:$0x3] %vm177, %v176
    // Predicated region
    $region46: #{mlp_q_agent_forward.1} parent=1 // pred_check
      _
    $region47: #{mlp_q_agent_forward.1} parent=1 // pred_check_branch
      %180 = sbr.rel (0) target = $region49
    $region48: #{mlp_q_agent_forward.1} parent=1 // pred_region
      _
    $region49: #{mlp_q_agent_forward.1} parent=1 // pred_fallthru
      _
    // Predicated region
    $region50: #{mlp_q_agent_forward.1} parent=1 // pred_check
      _
    $region51: #{mlp_q_agent_forward.1} parent=1 // pred_check_branch
      %182 = sbr.rel (0) target = $region53
    $region52: #{mlp_q_agent_forward.1} parent=1 // pred_region
      _
    $region53: #{mlp_q_agent_forward.1} parent=1 // pred_fallthru
      _
    %183 = vsyncpa [#allocation4], 1
    %184 = vsyncpa [#allocation6], 1

</llo_original>
